<compile_context>
chip_gen: v6e
topology: v6e:2x2x1
jax: 0.10.0
libtpu: 0.0.40
codegen_flags: <defaults>
</compile_context>

<pallas_src>
import functools

import jax
import jax.numpy as jnp
from jax.experimental import pallas as pl
from jax.experimental.pallas import tpu as pltpu


def _round_up(v, m):
    return (v + m - 1) // m * m


# ----------------------------- Pallas kernel ------------------------------ #
def _fused_gnn_kernel(a_ref, x_ref, w_ref, b_ref, o_ref, h_ref):
    """One grid step == one GCN layer.  h stays resident in VMEM scratch.

    a_ref : (Np, Np)        normalized adjacency, bf16  (constant block)
    x_ref : (Np, Fp)        padded input features, bf16 (constant block)
    w_ref : (1, Fp, Fp)     this layer's weight, bf16, laid out for h @ W
    b_ref : (1, 1, Fp)      this layer's bias, f32
    o_ref : (Np, Fp)        final-layer output, f32     (constant block)
    h_ref : (Np, Fp)        VMEM scratch: current hidden state, bf16
    """
    layer = pl.program_id(0)
    last = pl.num_programs(0) - 1

    @pl.when(layer == 0)
    def _():
        h_ref[...] = x_ref[...]

    # bf16 MXU matmuls, f32 accumulation.
    xw = jnp.dot(h_ref[...], w_ref[0], preferred_element_type=jnp.float32)
    out = jnp.dot(a_ref[...], xw.astype(jnp.bfloat16),
                  preferred_element_type=jnp.float32)
    out = out + b_ref[0]                       # (1, Fp) f32 broadcast

    @pl.when(layer < last)
    def _():
        # ReLU (+ dropout == identity in eval mode); keep h in VMEM for next layer.
        h_ref[...] = jnp.maximum(out, 0.0).astype(jnp.bfloat16)

    @pl.when(layer == last)
    def _():
        o_ref[...] = out


def fused_gnn(a_pad, x_pad, w_stack, b_stack):
    """Run all GCN layers in a single pallas_call."""
    n_pad = x_pad.shape[0]
    f_pad = x_pad.shape[1]
    num_layers = w_stack.shape[0]
    return pl.pallas_call(
        _fused_gnn_kernel,
        out_shape=jax.ShapeDtypeStruct((n_pad, f_pad), jnp.float32),
        grid=(num_layers,),
        in_specs=[
            pl.BlockSpec((n_pad, n_pad), lambda l: (0, 0)),      # A_hat
            pl.BlockSpec((n_pad, f_pad), lambda l: (0, 0)),      # X
            pl.BlockSpec((1, f_pad, f_pad), lambda l: (l, 0, 0)),  # W_l
            pl.BlockSpec((1, 1, f_pad), lambda l: (l, 0, 0)),      # b_l
        ],
        out_specs=pl.BlockSpec((n_pad, f_pad), lambda l: (0, 0)),
        scratch_shapes=[pltpu.VMEM((n_pad, f_pad), jnp.bfloat16)],
        compiler_params=pltpu.CompilerParams(
            dimension_semantics=("arbitrary",)   # layers are sequential
        ),
    )(a_pad, x_pad, w_stack, b_stack)


# ------------------------------- glue (JAX) -------------------------------- #
def build_normalized_adjacency(edge_index, num_nodes):
    """Dense PyG gcn_norm: Adj[dst, src] += 1 (directed, duplicates counted),
    add remaining self-loops, deg = in-degree, D^-1/2 Adj D^-1/2."""
    src, dst = edge_index[0], edge_index[1]
    a = jnp.zeros((num_nodes, num_nodes), jnp.float32).at[dst, src].add(1.0)
    diag = jnp.diagonal(a)
    a = a + jnp.diag(jnp.where(diag == 0, 1.0, 0.0))   # add_remaining_self_loops
    deg = a.sum(axis=1)
    d_inv_sqrt = jnp.where(deg > 0, jax.lax.rsqrt(deg), 0.0)
    return d_inv_sqrt[:, None] * a * d_inv_sqrt[None, :]


def init_gnn_params(key, in_dim, hid_dim, num_layers):
    """Glorot-uniform GCNConv weights (PyG layout: (out, in)), zero biases."""
    params = []
    dims = [in_dim] + [hid_dim] * num_layers
    for i in range(num_layers):
        key, wk = jax.random.split(key)
        fan_in, fan_out = dims[i], dims[i + 1]
        limit = (6.0 / (fan_in + fan_out)) ** 0.5
        w = jax.random.uniform(wk, (fan_out, fan_in), jnp.float32, -limit, limit)
        b = jnp.zeros((fan_out,), jnp.float32)
        params.append((w, b))
    return params


def pack_params_for_kernel(params, f_pad):
    """Transpose + zero-pad + stack weights/biases ONCE (not per forward)."""
    w_stack, b_stack = [], []
    for w, b in params:
        f_out, f_in = w.shape
        wt = jnp.zeros((f_pad, f_pad), jnp.float32).at[:f_in, :f_out].set(w.T)
        bp = jnp.zeros((1, f_pad), jnp.float32).at[0, :f_out].set(b)
        w_stack.append(wt)
        b_stack.append(bp)
    return (jnp.stack(w_stack).astype(jnp.bfloat16),      # (L, Fp, Fp) bf16
            jnp.stack(b_stack).astype(jnp.float32))       # (L, 1, Fp) f32


@functools.partial(jax.jit, static_argnames=("hid_dim",))
def gnn_forward(x, edge_index, w_stack, b_stack, hid_dim):
    """Equivalent of GNN.forward in eval mode (dropout == identity)."""
    # TODO(synk): training-mode dropout (p=0.1) not implemented; eval mode only.
    n, in_dim = x.shape
    f_pad = w_stack.shape[1]
    n_pad = _round_up(n, 8)   # sublane alignment

    a_hat = build_normalized_adjacency(edge_index, n)
    a_pad = jnp.zeros((n_pad, n_pad), jnp.bfloat16)
    a_pad = a_pad.at[:n, :n].set(a_hat.astype(jnp.bfloat16))
    x_pad = jnp.zeros((n_pad, f_pad), jnp.bfloat16)
    x_pad = x_pad.at[:n, :in_dim].set(x.astype(jnp.bfloat16))

    out = fused_gnn(a_pad, x_pad, w_stack, b_stack)
    return out[:n, :hid_dim]


# --------------------------------- main ------------------------------------ #
if __name__ == "__main__":
    key = jax.random.PRNGKey(0)

    num_nodes = 64
    in_dim = 16
    hid_dim = 32
    num_layers = 3
    num_edges = 128

    key, kx, ke, kp = jax.random.split(key, 4)
    x = jax.random.normal(kx, (num_nodes, in_dim), jnp.float32)
    edge_index = jax.random.randint(ke, (2, num_edges), 0, num_nodes, jnp.int32)

    params = init_gnn_params(kp, in_dim, hid_dim, num_layers)
    f_pad = max(128, _round_up(max(in_dim, hid_dim), 128))
    w_stack, b_stack = pack_params_for_kernel(params, f_pad)

    out = gnn_forward(x, edge_index, w_stack, b_stack, hid_dim)
    out = jax.block_until_ready(out)
    assert out.shape == (num_nodes, hid_dim)
    assert jnp.all(jnp.isfinite(out))
    print("KERNEL_OK")
</pallas_src>

<mosaic_0001>
module attributes {stable_mosaic.version = 11 : i64} {
  func.func private @main(%arg0: i32) attributes {dimension_semantics = [#tpu.dimension_semantics<core_parallel>], iteration_bounds = array<i64: 2>, tpu.core_type = #tpu.core_type<sc_scalar_subcore>, window_params = []} {
    return
  }
}

module attributes {stable_mosaic.version = 11 : i64} {
  func.func private @main(%arg0: i32) attributes {dimension_semantics = [#tpu.dimension_semantics<core_parallel>], iteration_bounds = array<i64: 2>, tpu.core_type = #tpu.core_type<sc_scalar_subcore>, window_params = []} {
    return
  }
}

module attributes {stable_mosaic.version = 11 : i64} {
  func.func @_fused_gnn_kernel(%arg0: i32, %arg1: memref<64x64xbf16, #tpu.memory_space<vmem>>, %arg2: memref<64x128xbf16, #tpu.memory_space<vmem>>, %arg3: memref<1x128x128xbf16, #tpu.memory_space<vmem>>, %arg4: memref<1x1x128xf32, #tpu.memory_space<vmem>>, %arg5: memref<64x128xf32, #tpu.memory_space<vmem>>, %arg6: memref<64x128xbf16, #tpu.memory_space<vmem>>) attributes {dimension_semantics = [#tpu.dimension_semantics<arbitrary>], iteration_bounds = array<i64: 3>, scalar_prefetch = 0 : i64, scratch_operands = 1 : i64, tpu.core_type = #tpu.core_type<tc>, window_params = [{pipeline_mode = #tpu.pipeline_mode<synchronous>, transform_indices = @transform_0, window_bounds = array<i64: 64, 64>}, {pipeline_mode = #tpu.pipeline_mode<synchronous>, transform_indices = @transform_1, window_bounds = array<i64: 64, 128>}, {transform_indices = @transform_2, window_bounds = array<i64: 1, 128, 128>}, {transform_indices = @transform_3, window_bounds = array<i64: 1, 1, 128>}, {pipeline_mode = #tpu.pipeline_mode<synchronous>, transform_indices = @transform_4, window_bounds = array<i64: 64, 128>}]} {
    %c0_i32 = arith.constant 0 : i32
    %0 = arith.cmpi eq, %arg0, %c0_i32 : i32
    %1 = arith.extui %0 : i1 to i32
    %c0_i32_0 = arith.constant 0 : i32
    %2 = arith.cmpi ne, %1, %c0_i32_0 : i32
    scf.if %2 {
      %c0_14 = arith.constant 0 : index
      %c0_15 = arith.constant 0 : index
      %20 = vector.load %arg2[%c0_14, %c0_15] : memref<64x128xbf16, #tpu.memory_space<vmem>>, vector<64x128xbf16>
      %c0_16 = arith.constant 0 : index
      %c0_17 = arith.constant 0 : index
      %21 = vector.load %arg6[%c0_16, %c0_17] : memref<64x128xbf16, #tpu.memory_space<vmem>>, vector<64x128xbf16>
      tpu.vector_store %arg6[%c0_16, %c0_17], %20 {strides = array<i32>} : memref<64x128xbf16, #tpu.memory_space<vmem>>, vector<64x128xbf16>,
    } else {
    }
    %c0 = arith.constant 0 : index
    %c0_1 = arith.constant 0 : index
    %3 = vector.load %arg6[%c0, %c0_1] : memref<64x128xbf16, #tpu.memory_space<vmem>>, vector<64x128xbf16>
    %c0_2 = arith.constant 0 : index
    %c0_3 = arith.constant 0 : index
    %c0_4 = arith.constant 0 : index
    %4 = vector.load %arg3[%c0_2, %c0_3, %c0_4] : memref<1x128x128xbf16, #tpu.memory_space<vmem>>, vector<1x128x128xbf16>
    %5 = vector.shape_cast %4 : vector<1x128x128xbf16> to vector<128x128xbf16>
    %cst = arith.constant dense<0.000000e+00> : vector<64x128xf32>
    %6 = tpu.matmul %3, %5, %cst {dimension_numbers = #tpu.dot_dimension_numbers<[1], [0], [0], [1], [0, 0, 1, 1], [], []>} : vector<64x128xbf16>, vector<128x128xbf16>, vector<64x128xf32> -> vector<64x128xf32>
    %c0_5 = arith.constant 0 : index
    %c0_6 = arith.constant 0 : index
    %7 = vector.load %arg1[%c0_5, %c0_6] : memref<64x64xbf16, #tpu.memory_space<vmem>>, vector<64x64xbf16>
    %8 = arith.truncf %6 : vector<64x128xf32> to vector<64x128xbf16>
    %cst_7 = arith.constant dense<0.000000e+00> : vector<64x128xf32>
    %9 = tpu.matmul %7, %8, %cst_7 {dimension_numbers = #tpu.dot_dimension_numbers<[1], [0], [0], [1], [0, 0, 1, 1], [], []>} : vector<64x64xbf16>, vector<64x128xbf16>, vector<64x128xf32> -> vector<64x128xf32>
    %c0_8 = arith.constant 0 : index
    %c0_9 = arith.constant 0 : index
    %c0_10 = arith.constant 0 : index
    %10 = vector.load %arg4[%c0_8, %c0_9, %c0_10] : memref<1x1x128xf32, #tpu.memory_space<vmem>>, vector<1x1x128xf32>
    %11 = vector.shape_cast %10 : vector<1x1x128xf32> to vector<1x128xf32>
    %12 = vector.broadcast %11 : vector<1x128xf32> to vector<64x128xf32>
    %13 = arith.addf %9, %12 : vector<64x128xf32>
    %c2_i32 = arith.constant 2 : i32
    %14 = arith.cmpi slt, %arg0, %c2_i32 : i32
    %15 = arith.extui %14 : i1 to i32
    %c0_i32_11 = arith.constant 0 : i32
    %16 = arith.cmpi ne, %15, %c0_i32_11 : i32
    scf.if %16 {
      %cst_14 = arith.constant 0.000000e+00 : f32
      %20 = vector.broadcast %cst_14 : f32 to vector<64x128xf32>
      %21 = arith.maximumf %13, %20 : vector<64x128xf32>
      %22 = arith.truncf %21 : vector<64x128xf32> to vector<64x128xbf16>
      %c0_15 = arith.constant 0 : index
      %c0_16 = arith.constant 0 : index
      %23 = vector.load %arg6[%c0_15, %c0_16] : memref<64x128xbf16, #tpu.memory_space<vmem>>, vector<64x128xbf16>
      tpu.vector_store %arg6[%c0_15, %c0_16], %22 {strides = array<i32>} : memref<64x128xbf16, #tpu.memory_space<vmem>>, vector<64x128xbf16>,
    } else {
    }
    %c2_i32_12 = arith.constant 2 : i32
    %17 = arith.cmpi eq, %arg0, %c2_i32_12 : i32
    %18 = arith.extui %17 : i1 to i32
    %c0_i32_13 = arith.constant 0 : i32
    %19 = arith.cmpi ne, %18, %c0_i32_13 : i32
    scf.if %19 {
      %c0_14 = arith.constant 0 : index
      %c0_15 = arith.constant 0 : index
      %20 = vector.load %arg5[%c0_14, %c0_15] : memref<64x128xf32, #tpu.memory_space<vmem>>, vector<64x128xf32>
      tpu.vector_store %arg5[%c0_14, %c0_15], %13 {strides = array<i32>} : memref<64x128xf32, #tpu.memory_space<vmem>>, vector<64x128xf32>,
    } else {
    }
    return
  }
  func.func @transform_0(%arg0: i32) -> (i32, i32) {
    %c0_i32 = arith.constant 0 : i32
    %c0_i32_0 = arith.constant 0 : i32
    %c0_i32_1 = arith.constant 0 : i32
    return %c0_i32, %c0_i32_0 : i32, i32
  }
  func.func @transform_1(%arg0: i32) -> (i32, i32) {
    %c0_i32 = arith.constant 0 : i32
    %c0_i32_0 = arith.constant 0 : i32
    %c0_i32_1 = arith.constant 0 : i32
    return %c0_i32, %c0_i32_0 : i32, i32
  }
  func.func @transform_2(%arg0: i32) -> (i32, i32, i32) {
    %c0_i32 = arith.constant 0 : i32
    %c0_i32_0 = arith.constant 0 : i32
    %c0_i32_1 = arith.constant 0 : i32
    return %arg0, %c0_i32, %c0_i32_0 : i32, i32, i32
  }
  func.func @transform_3(%arg0: i32) -> (i32, i32, i32) {
    %c0_i32 = arith.constant 0 : i32
    %c0_i32_0 = arith.constant 0 : i32
    %c0_i32_1 = arith.constant 0 : i32
    return %arg0, %c0_i32, %c0_i32_0 : i32, i32, i32
  }
  func.func @transform_4(%arg0: i32) -> (i32, i32) {
    %c0_i32 = arith.constant 0 : i32
    %c0_i32_0 = arith.constant 0 : i32
    %c0_i32_1 = arith.constant 0 : i32
    return %c0_i32, %c0_i32_0 : i32, i32
  }
}

</mosaic_0001>

<llo_original>
// kernel: gnn_forward.1
$region0: #{gnn_forward.1}
  #allocation0 [shape = 'u32[]', space=smem, size = 0x4, offset = 0x4, fixed_abs, tag = 'smem constant byte address 0x4 - core index']
  #allocation1 [shape = 'u32[144,128]{1,0:T(1,128)}', space=vmem, size = 0x12000, scoped, tag = 'internal scratch']
  #allocation2 [shape = 'bf16[64,128]{1,0:T(8,128)(2,1)}', space=vmem, size = 0x4000, scoped, tag = 'scratch operand']
  %s0 = inlined_call_operand.vmem [shape: bf16[64,64], index: 0, kind: input, shape index: {}]
  %s1 = inlined_call_operand.vmem [shape: bf16[64,128], index: 1, kind: input, shape index: {}]
  %s2 = inlined_call_operand.vmem [shape: bf16[3,128,128], index: 2, kind: input, shape index: {}]
  %s3 = inlined_call_operand.vmem [shape: f32[3,1,128], index: 3, kind: input, shape index: {}]
  %s4 = inlined_call_operand.vmem [shape: f32[64,128], index: 4, kind: output, shape index: {}]
  %s5 = sld [smem:[#allocation0]]
  $region61: #{gnn_forward.1} parent=0
    _
  %s7 = ssub.s32 1, %s5
  %s8 = scalar_select 0, %s7, %s5
  loop: start=0, step=1, limit=5
  $region2: #{gnn_forward.1} parent=0 // loop_pre_header
    _
  $region3: #{gnn_forward.1} parent=0 // loop_header
    %s10 = sphi 0, %s14
    %p11 = scmp.ge.s32.totalorder %s10, 5
    %s18 = sphi 0, %s18
    %s20 = sphi 0, %s18
    %s21 = sphi 0, %s20
    %s35 = sphi 0, %s21
    %s39 = sphi 0, %s39
    %s41 = sphi 0, %s39
    %s42 = sphi 0, %s41
    %s56 = sphi 0, %s42
    %s62 = sphi 0, %s64
    %s65 = sphi 0, %s62
    %s66 = sphi 0, %s65
    %s82 = sphi 0, %s66
    %s88 = sphi 0, %s90
    %s91 = sphi 0, %s88
    %s92 = sphi 0, %s91
    %s108 = sphi 0, %s92
    %s112 = sphi 0, %s112
    %s114 = sphi 0, %s112
    %s115 = sphi 0, %s114
    %s129 = sphi 0, %s115
  $region4: #{gnn_forward.1} parent=0 // loop_header_branch
    %13 = sbr.rel (%p11) target = $region8
  $region5: #{gnn_forward.1} parent=0 // loop_body
    %s15 = ssub.s32 %s10, 1
    %s16 = ssub.s32 %s10, 2
    %s17 = sadd.s32 %s10, 1
    %s19 = sadd.s32 %s18, 1
    %p22 = scmp.eq.s32.totalorder %s10, 2
    %p23 = scmp.ne.s32.totalorder %s18, %s20
    %p24 = scmp.eq.s32.totalorder %s10, 0
    %p25 = por %p23, %p24
    %p26 = scmp.ne.s32.totalorder %s18, %s20
    %p27 = scmp.eq.s32.totalorder %s15, 2
    %p28 = por %p26, %p27
    %p29 = scmp.ne.s32.totalorder %s20, %s21
    %p30 = scmp.eq.s32.totalorder %s15, 0
    %p31 = por %p29, %p30
    %p32 = scmp.ne.s32.totalorder %s20, %s21
    %p33 = scmp.eq.s32.totalorder %s16, 2
    %p34 = por %p32, %p33
    %p36 = scmp.ne.s32.totalorder %s21, %s35
    %p37 = scmp.eq.s32.totalorder %s16, 0
    %p38 = por %p36, %p37
    %s40 = sadd.s32 %s39, 1
    %p43 = scmp.eq.s32.totalorder %s10, 2
    %p44 = scmp.ne.s32.totalorder %s39, %s41
    %p45 = scmp.eq.s32.totalorder %s10, 0
    %p46 = por %p44, %p45
    %p47 = scmp.ne.s32.totalorder %s39, %s41
    %p48 = scmp.eq.s32.totalorder %s15, 2
    %p49 = por %p47, %p48
    %p50 = scmp.ne.s32.totalorder %s41, %s42
    %p51 = scmp.eq.s32.totalorder %s15, 0
    %p52 = por %p50, %p51
    %p53 = scmp.ne.s32.totalorder %s41, %s42
    %p54 = scmp.eq.s32.totalorder %s16, 2
    %p55 = por %p53, %p54
    %p57 = scmp.ne.s32.totalorder %s42, %s56
    %p58 = scmp.eq.s32.totalorder %s16, 0
    %p59 = por %p57, %p58
    %s60 = ssub.s32 %s10, %s17
    %p61 = scmp.eq.s32.totalorder %s60, 0
    %s63 = sadd.s32 %s62, 1
    %s64 = scalar_select %p61, %s62, %s63
    %p67 = pneg %p61
    %p68 = scmp.eq.s32.totalorder %s10, 2
    %p69 = por %p67, %p68
    %p70 = scmp.ne.s32.totalorder %s62, %s65
    %p71 = scmp.eq.s32.totalorder %s10, 0
    %p72 = por %p70, %p71
    %p73 = scmp.ne.s32.totalorder %s62, %s65
    %p74 = scmp.eq.s32.totalorder %s15, 2
    %p75 = por %p73, %p74
    %p76 = scmp.ne.s32.totalorder %s65, %s66
    %p77 = scmp.eq.s32.totalorder %s15, 0
    %p78 = por %p76, %p77
    %p79 = scmp.ne.s32.totalorder %s65, %s66
    %p80 = scmp.eq.s32.totalorder %s16, 2
    %p81 = por %p79, %p80
    %p83 = scmp.ne.s32.totalorder %s66, %s82
    %p84 = scmp.eq.s32.totalorder %s16, 0
    %p85 = por %p83, %p84
    %s86 = ssub.s32 %s10, %s17
    %p87 = scmp.eq.s32.totalorder %s86, 0
    %s89 = sadd.s32 %s88, 1
    %s90 = scalar_select %p87, %s88, %s89
    %p93 = pneg %p87
    %p94 = scmp.eq.s32.totalorder %s10, 2
    %p95 = por %p93, %p94
    %p96 = scmp.ne.s32.totalorder %s88, %s91
    %p97 = scmp.eq.s32.totalorder %s10, 0
    %p98 = por %p96, %p97
    %p99 = scmp.ne.s32.totalorder %s88, %s91
    %p100 = scmp.eq.s32.totalorder %s15, 2
    %p101 = por %p99, %p100
    %p102 = scmp.ne.s32.totalorder %s91, %s92
    %p103 = scmp.eq.s32.totalorder %s15, 0
    %p104 = por %p102, %p103
    %p105 = scmp.ne.s32.totalorder %s91, %s92
    %p106 = scmp.eq.s32.totalorder %s16, 2
    %p107 = por %p105, %p106
    %p109 = scmp.ne.s32.totalorder %s92, %s108
    %p110 = scmp.eq.s32.totalorder %s16, 0
    %p111 = por %p109, %p110
    %s113 = sadd.s32 %s112, 1
    %p116 = scmp.eq.s32.totalorder %s10, 2
    %p117 = scmp.ne.s32.totalorder %s112, %s114
    %p118 = scmp.eq.s32.totalorder %s10, 0
    %p119 = por %p117, %p118
    %p120 = scmp.ne.s32.totalorder %s112, %s114
    %p121 = scmp.eq.s32.totalorder %s15, 2
    %p122 = por %p120, %p121
    %p123 = scmp.ne.s32.totalorder %s114, %s115
    %p124 = scmp.eq.s32.totalorder %s15, 0
    %p125 = por %p123, %p124
    %p126 = scmp.ne.s32.totalorder %s114, %s115
    %p127 = scmp.eq.s32.totalorder %s16, 2
    %p128 = por %p126, %p127
    %p130 = scmp.ne.s32.totalorder %s115, %s129
    %p131 = scmp.eq.s32.totalorder %s16, 0
    %p132 = por %p130, %p131
    %p133 = scmp.le.s32.totalorder 1, %s10
    %p134 = scmp.lt.s32.totalorder %s10, 4
    %p135 = pnand %p133, %p134
    %p136 = pneg %p135
    // Predicated region
    $region9: #{gnn_forward.1} parent=5 // pred_check
      _
    $region10: #{gnn_forward.1} parent=5 // pred_check_branch
      %138 = sbr.rel (%p135) target = $region12
    $region11: #{gnn_forward.1} parent=5 // pred_region
      %s139 = ssub.s32 %s10, 1
      // Predicated region
      $region13: #{gnn_forward.1} parent=11 // pred_check
        %p140 = pneg %p31
      $region14: #{gnn_forward.1} parent=11 // pred_check_branch
        %142 = sbr.rel (%p140) target = $region16
      $region15: #{gnn_forward.1} parent=11 // pred_region
        _
      $region16: #{gnn_forward.1} parent=11 // pred_fallthru
        _
      // Predicated region
      $region17: #{gnn_forward.1} parent=11 // pred_check
        %p143 = pneg %p52
      $region18: #{gnn_forward.1} parent=11 // pred_check_branch
        %145 = sbr.rel (%p143) target = $region20
      $region19: #{gnn_forward.1} parent=11 // pred_region
        _
      $region20: #{gnn_forward.1} parent=11 // pred_fallthru
        _
    $region12: #{gnn_forward.1} parent=5 // pred_fallthru
      _
    %p146 = scmp.lt.s32.totalorder %s10, 3
    // Predicated region
    $region21: #{gnn_forward.1} parent=5 // pred_check
      %p147 = pneg %p146
    $region22: #{gnn_forward.1} parent=5 // pred_check_branch
      %149 = sbr.rel (%p147) target = $region24
    $region23: #{gnn_forward.1} parent=5 // pred_region
      // Predicated region
      $region25: #{gnn_forward.1} parent=23 // pred_check
        %p150 = pneg %p72
      $region26: #{gnn_forward.1} parent=23 // pred_check_branch
        %152 = sbr.rel (%p150) target = $region28
      $region27: #{gnn_forward.1} parent=23 // pred_region
        %p153 = scmp.lt.s32.totalorder %s10, 2
        %s154 = scalar_select %p153, %s10, 2
        %s155 = smul.addr %s154, 16
        %s156 = smul.addr %s155, 4
        %s157 = scalar_lea.vmem %s2, %s156
      $region28: #{gnn_forward.1} parent=23 // pred_fallthru
        _
      // Predicated region
      $region29: #{gnn_forward.1} parent=23 // pred_check
        %p158 = pneg %p98
      $region30: #{gnn_forward.1} parent=23 // pred_check_branch
        %160 = sbr.rel (%p158) target = $region32
      $region31: #{gnn_forward.1} parent=23 // pred_region
        %p161 = scmp.lt.s32.totalorder %s10, 2
        %s162 = scalar_select %p161, %s10, 2
        %s163 = scalar_lea.vmem %s3, %s162
      $region32: #{gnn_forward.1} parent=23 // pred_fallthru
        _
    $region24: #{gnn_forward.1} parent=5 // pred_fallthru
      _
    %p164 = scmp.le.s32.totalorder 1, %s10
    %p165 = scmp.lt.s32.totalorder %s10, 4
    %p166 = pnand %p164, %p165
    %p167 = pneg %p166
    // Predicated region
    $region33: #{gnn_forward.1} parent=5 // pred_check
      _
    $region34: #{gnn_forward.1} parent=5 // pred_check_branch
      %169 = sbr.rel (%p166) target = $region36
    $region35: #{gnn_forward.1} parent=5 // pred_region
      %s170 = ssub.s32 %s10, 1
      %p171 = pneg %p31
      %p172 = pneg %p28
      %p173 = pneg %p52
      %p174 = pneg %p49
      %p175 = scmp.lt.s32.totalorder %s15, 2
      %s176 = scalar_select %p175, %s15, 2
      %s177 = smul.addr %s176, 16
      %s178 = smul.addr %s177, 4
      %s179 = scalar_lea.vmem %s2, %s178
      %p180 = pneg %p78
      %p181 = pneg %p75
      %p182 = scmp.lt.s32.totalorder %s15, 2
      %s183 = scalar_select %p182, %s15, 2
      %s184 = scalar_lea.vmem %s3, %s183
      %p185 = pneg %p104
      %p186 = pneg %p101
      %p187 = pneg %p125
      %p188 = pneg %p122
      %p189 = scmp.lt.s32.totalorder %s15, 2
      %s190 = scalar_select %p189, %s15, 2
      %s191 = smul.addr %s190, 16
      %s192 = smul.addr %s191, 4
      %s193 = scalar_lea.vmem %s2, %s192
      %p194 = scmp.lt.s32.totalorder %s15, 2
      %s195 = scalar_select %p194, %s15, 2
      %s196 = scalar_lea.vmem %s3, %s195
      %p198 = scmp.eq.s32.totalorder %s15, 0
      // Predicated region
      $region37: #{gnn_forward.1} parent=35 // pred_check
        %p199 = pneg %p198
      $region38: #{gnn_forward.1} parent=35 // pred_check_branch
        %201 = sbr.rel (%p199) target = $region40
      $region39: #{gnn_forward.1} parent=35 // pred_region
        %v202 = vld [vmem:[%s1] sm:$0xf]
        %v203 = vld [vmem:[%s1 + $0x4] sm:$0xf]
        %v204 = vld [vmem:[%s1 + $0x8] sm:$0xf]
        %v205 = vld [vmem:[%s1 + $0xc] sm:$0xf]
        %v206 = vld [vmem:[%s1 + $0x10] sm:$0xf]
        %v207 = vld [vmem:[%s1 + $0x14] sm:$0xf]
        %v208 = vld [vmem:[%s1 + $0x18] sm:$0xf]
        %v209 = vld [vmem:[%s1 + $0x1c] sm:$0xf]
        %210 = vst [vmem:[#allocation2] sm:$0xf] %v202
        %211 = vst [vmem:[#allocation2 + $0x4] sm:$0xf] %v203
        %212 = vst [vmem:[#allocation2 + $0x8] sm:$0xf] %v204
        %213 = vst [vmem:[#allocation2 + $0xc] sm:$0xf] %v205
        %214 = vst [vmem:[#allocation2 + $0x10] sm:$0xf] %v206
        %215 = vst [vmem:[#allocation2 + $0x14] sm:$0xf] %v207
        %216 = vst [vmem:[#allocation2 + $0x18] sm:$0xf] %v208
        %217 = vst [vmem:[#allocation2 + $0x1c] sm:$0xf] %v209
      $region40: #{gnn_forward.1} parent=35 // pred_fallthru
        _
      %v218 = vld [vmem:[#allocation2] sm:$0xf]
      %v219 = vld [vmem:[#allocation2 + $0x4] sm:$0xf]
      %v220 = vld [vmem:[#allocation2 + $0x8] sm:$0xf]
      %v221 = vld [vmem:[#allocation2 + $0xc] sm:$0xf]
      %v222 = vld [vmem:[#allocation2 + $0x10] sm:$0xf]
      %v223 = vld [vmem:[#allocation2 + $0x14] sm:$0xf]
      %v224 = vld [vmem:[#allocation2 + $0x18] sm:$0xf]
      %v225 = vld [vmem:[#allocation2 + $0x1c] sm:$0xf]
      %v226 = vld [vmem:[%s193] sm:$0xf]
      %v227 = vld [vmem:[%s193 + $0x4] sm:$0xf]
      %v228 = vld [vmem:[%s193 + $0x8] sm:$0xf]
      %v229 = vld [vmem:[%s193 + $0xc] sm:$0xf]
      %v230 = vld [vmem:[%s193 + $0x10] sm:$0xf]
      %v231 = vld [vmem:[%s193 + $0x14] sm:$0xf]
      %v232 = vld [vmem:[%s193 + $0x18] sm:$0xf]
      %v233 = vld [vmem:[%s193 + $0x1c] sm:$0xf]
      %v234 = vld [vmem:[%s193 + $0x20] sm:$0xf]
      %v235 = vld [vmem:[%s193 + $0x24] sm:$0xf]
      %v236 = vld [vmem:[%s193 + $0x28] sm:$0xf]
      %v237 = vld [vmem:[%s193 + $0x2c] sm:$0xf]
      %v238 = vld [vmem:[%s193 + $0x30] sm:$0xf]
      %v239 = vld [vmem:[%s193 + $0x34] sm:$0xf]
      %v240 = vld [vmem:[%s193 + $0x38] sm:$0xf]
      %v241 = vld [vmem:[%s193 + $0x3c] sm:$0xf]
      %v250 = vunpack.c.l.b16 %v218
      %v251 = vunpack.c.l.b16 %v219
      %v252 = vunpack.c.l.b16 %v220
      %v253 = vunpack.c.l.b16 %v221
      %v254 = vunpack.c.l.b16 %v222
      %v255 = vunpack.c.l.b16 %v223
      %v256 = vunpack.c.l.b16 %v224
      %v257 = vunpack.c.l.b16 %v225
      %v258 = vpack.c.b16 %v251, %v250
      %v259 = vpack.c.b16 %v253, %v252
      %v260 = vpack.c.b16 %v255, %v254
      %v261 = vpack.c.b16 %v257, %v256
      %v282 = vunpack.c.l.b16 %v226
      %v283 = vunpack.c.l.b16 %v227
      %v284 = vunpack.c.l.b16 %v228
      %v285 = vunpack.c.l.b16 %v229
      %v286 = vunpack.c.l.b16 %v230
      %v287 = vunpack.c.l.b16 %v231
      %v288 = vunpack.c.l.b16 %v232
      %v289 = vunpack.c.l.b16 %v233
      %v290 = vunpack.c.l.b16 %v234
      %v291 = vunpack.c.l.b16 %v235
      %v292 = vunpack.c.l.b16 %v236
      %v293 = vunpack.c.l.b16 %v237
      %v294 = vunpack.c.l.b16 %v238
      %v295 = vunpack.c.l.b16 %v239
      %v296 = vunpack.c.l.b16 %v240
      %v297 = vunpack.c.l.b16 %v241
      %v298 = vpack.c.b16 %v283, %v282
      %v299 = vpack.c.b16 %v285, %v284
      %v300 = vpack.c.b16 %v287, %v286
      %v301 = vpack.c.b16 %v289, %v288
      %v302 = vpack.c.b16 %v291, %v290
      %v303 = vpack.c.b16 %v293, %v292
      %v304 = vpack.c.b16 %v295, %v294
      %v305 = vpack.c.b16 %v297, %v296
      %314 = vmatprep.subr.bf16.mxu0 0
      %315 = vmatpush1.bf16.msra.mxu0 %v305
      %316 = vmatprep.subr.bf16.mxu0 0
      %317 = vmatpush1.bf16.msra.mxu0 %v304
      %318 = vmatprep.subr.bf16.mxu0 0
      %319 = vmatpush1.bf16.msra.mxu0 %v303
      %320 = vmatprep.subr.bf16.mxu0 0
      %321 = vmatpush1.bf16.msra.mxu0 %v302
      %322 = vmatprep.subr.bf16.mxu0 0
      %323 = vmatpush1.bf16.msra.mxu0 %v301
      %324 = vmatprep.subr.bf16.mxu0 0
      %325 = vmatpush1.bf16.msra.mxu0 %v300
      %326 = vmatprep.subr.bf16.mxu0 0
      %327 = vmatpush1.bf16.msra.mxu0 %v299
      %328 = vmatprep.subr.bf16.mxu0 0
      %329 = vmatpush1.bf16.msra.mxu0 %v298
      %330 = vmatprep.subr.bf16.mxu0 0
      %331 = vmatpush2.bf16.msra.mxu0 0
      %332 = vmatprep.subr.bf16.mxu0 0
      %333 = vmatpush2.bf16.msra.mxu0 0
      %334 = vmatprep.subr.bf16.mxu0 0
      %335 = vmatpush2.bf16.msra.mxu0 0
      %336 = vmatprep.subr.bf16.mxu0 0
      %337 = vmatpush2.bf16.msra.mxu0 0
      %338 = vmatprep.subr.bf16.mxu0 0
      %339 = vmatpush2.bf16.msra.mxu0 0
      %340 = vmatprep.subr.bf16.mxu0 0
      %341 = vmatpush2.bf16.msra.mxu0 0
      %342 = vmatprep.subr.bf16.mxu0 0
      %343 = vmatpush2.bf16.msra.mxu0 0
      %344 = vmatprep.subr.bf16.mxu0 0
      %345 = vmatpush2.bf16.msra.mxu0 0
      %346 = vmatprep.mubr.bf16.mxu0 0
      %347 = vmatmul.mubr.bf16.gmra.mxu0 %v258
      %v348 = vpop.f32.mrf.mxu0
      %v349 = vadd.f32 0.0, %v348
      %v350 = vpop.f32.mrf.mxu0
      %v351 = vpop.f32.mrf.mxu0
      %v352 = vadd.f32 0.0, %v351
      %v353 = vpop.f32.mrf.mxu0
      %354 = vmatprep.mubr.bf16.mxu0 0
      %355 = vmatmul.mubr.bf16.gmra.mxu0 %v259
      %v356 = vpop.f32.mrf.mxu0
      %v357 = vadd.f32 0.0, %v356
      %v358 = vpop.f32.mrf.mxu0
      %v359 = vpop.f32.mrf.mxu0
      %v360 = vadd.f32 0.0, %v359
      %v361 = vpop.f32.mrf.mxu0
      %362 = vmatprep.mubr.bf16.mxu0 0
      %363 = vmatmul.mubr.bf16.gmra.mxu0 %v260
      %v364 = vpop.f32.mrf.mxu0
      %v365 = vadd.f32 0.0, %v364
      %v366 = vpop.f32.mrf.mxu0
      %v367 = vpop.f32.mrf.mxu0
      %v368 = vadd.f32 0.0, %v367
      %v369 = vpop.f32.mrf.mxu0
      %370 = vmatprep.mubr.bf16.mxu0 0
      %371 = vmatmul.mubr.bf16.gmra.mxu0 %v261
      %v372 = vpop.f32.mrf.mxu0
      %v373 = vadd.f32 0.0, %v372
      %v374 = vpop.f32.mrf.mxu0
      %v375 = vpop.f32.mrf.mxu0
      %v376 = vadd.f32 0.0, %v375
      %v377 = vpop.f32.mrf.mxu0
      %378 = vdwg.mxu0
      %v379 = vld [vmem:[%s0] sm:$0xf]
      %v380 = vld [vmem:[%s0 + $0x4] sm:$0xf]
      %v381 = vld [vmem:[%s0 + $0x8] sm:$0xf]
      %v382 = vld [vmem:[%s0 + $0xc] sm:$0xf]
      %v383 = vld [vmem:[%s0 + $0x10] sm:$0xf]
      %v384 = vld [vmem:[%s0 + $0x14] sm:$0xf]
      %v385 = vld [vmem:[%s0 + $0x18] sm:$0xf]
      %v386 = vld [vmem:[%s0 + $0x1c] sm:$0xf]
      %v387 = vpack.c.bf16 %v352, %v349
      %v388 = vpack.c.bf16 %v360, %v357
      %v389 = vpack.c.bf16 %v368, %v365
      %v390 = vpack.c.bf16 %v376, %v373
      %v391 = vld [vmem:[%s196] sm:$0x1]
      %v393 = vlaneseq
      %v394 = vshrl.u32 %v393, 7
      %v395 = vsub.s32 0, %v394
      %v396 = vrot.slane %v391, %v395
      %v406 = vunpack.c.l.b16 %v379
      %v407 = vunpack.c.l.b16 %v380
      %v408 = vunpack.c.l.b16 %v381
      %v409 = vunpack.c.l.b16 %v382
      %v410 = vunpack.c.l.b16 %v383
      %v411 = vunpack.c.l.b16 %v384
      %v412 = vunpack.c.l.b16 %v385
      %v413 = vunpack.c.l.b16 %v386
      %v414 = vpack.c.b16 %v407, %v406
      %v415 = vpack.c.b16 %v409, %v408
      %v416 = vpack.c.b16 %v411, %v410
      %v417 = vpack.c.b16 %v413, %v412
      %vm418 = vcmask 523264
      %v420 = vsel %vm418, %v414, 0
      %v423 = vsel %vm418, %v415, 0
      %v426 = vsel %vm418, %v416, 0
      %v429 = vsel %vm418, %v417, 0
      %431 = vmatprep.subr.bf16.mxu0 0
      %432 = vmatpush1.bf16.msra.mxu0 0
      %433 = vmatprep.subr.bf16.mxu0 0
      %434 = vmatpush1.bf16.msra.mxu0 0
      %435 = vmatprep.subr.bf16.mxu0 0
      %436 = vmatpush1.bf16.msra.mxu0 0
      %437 = vmatprep.subr.bf16.mxu0 0
      %438 = vmatpush1.bf16.msra.mxu0 0
      %439 = vmatprep.subr.bf16.mxu0 0
      %440 = vmatpush1.bf16.msra.mxu0 %v390
      %441 = vmatprep.subr.bf16.mxu0 0
      %442 = vmatpush1.bf16.msra.mxu0 %v389
      %443 = vmatprep.subr.bf16.mxu0 0
      %444 = vmatpush1.bf16.msra.mxu0 %v388
      %445 = vmatprep.subr.bf16.mxu0 0
      %446 = vmatpush1.bf16.msra.mxu0 %v387
      %447 = vmatprep.subr.bf16.mxu0 0
      %448 = vmatpush2.bf16.msra.mxu0 0
      %449 = vmatprep.subr.bf16.mxu0 0
      %450 = vmatpush2.bf16.msra.mxu0 0
      %451 = vmatprep.subr.bf16.mxu0 0
      %452 = vmatpush2.bf16.msra.mxu0 0
      %453 = vmatprep.subr.bf16.mxu0 0
      %454 = vmatpush2.bf16.msra.mxu0 0
      %455 = vmatprep.subr.bf16.mxu0 0
      %456 = vmatpush2.bf16.msra.mxu0 0
      %457 = vmatprep.subr.bf16.mxu0 0
      %458 = vmatpush2.bf16.msra.mxu0 0
      %459 = vmatprep.subr.bf16.mxu0 0
      %460 = vmatpush2.bf16.msra.mxu0 0
      %461 = vmatprep.subr.bf16.mxu0 0
      %462 = vmatpush2.bf16.msra.mxu0 0
      %463 = vmatprep.mubr.bf16.mxu0 0
      %464 = vmatmul.mubr.bf16.gmra.mxu0 %v420
      %v465 = vpop.f32.mrf.mxu0
      %v466 = vadd.f32 %v396, %v465
      %v467 = vpop.f32.mrf.mxu0
      %v468 = vpop.f32.mrf.mxu0
      %v469 = vadd.f32 %v396, %v468
      %v470 = vpop.f32.mrf.mxu0
      %471 = vmatprep.mubr.bf16.mxu0 0
      %472 = vmatmul.mubr.bf16.gmra.mxu0 %v423
      %v473 = vpop.f32.mrf.mxu0
      %v474 = vadd.f32 %v396, %v473
      %v475 = vpop.f32.mrf.mxu0
      %v476 = vpop.f32.mrf.mxu0
      %v477 = vadd.f32 %v396, %v476
      %v478 = vpop.f32.mrf.mxu0
      %479 = vmatprep.mubr.bf16.mxu0 0
      %480 = vmatmul.mubr.bf16.gmra.mxu0 %v426
      %v481 = vpop.f32.mrf.mxu0
      %v482 = vadd.f32 %v396, %v481
      %v483 = vpop.f32.mrf.mxu0
      %v484 = vpop.f32.mrf.mxu0
      %v485 = vadd.f32 %v396, %v484
      %v486 = vpop.f32.mrf.mxu0
      %487 = vmatprep.mubr.bf16.mxu0 0
      %488 = vmatmul.mubr.bf16.gmra.mxu0 %v429
      %v489 = vpop.f32.mrf.mxu0
      %v490 = vadd.f32 %v396, %v489
      %v491 = vpop.f32.mrf.mxu0
      %v492 = vpop.f32.mrf.mxu0
      %v493 = vadd.f32 %v396, %v492
      %v494 = vpop.f32.mrf.mxu0
      %495 = vdwg.mxu0
      %p496 = scmp.lt.s32.totalorder %s15, 2
      // Predicated region
      $region41: #{gnn_forward.1} parent=35 // pred_check
        %p497 = pneg %p496
      $region42: #{gnn_forward.1} parent=35 // pred_check_branch
        %499 = sbr.rel (%p497) target = $region44
      $region43: #{gnn_forward.1} parent=35 // pred_region
        %v500 = vmax.f32 %v466, 0.0
        %v501 = vmax.f32 %v469, 0.0
        %v502 = vmax.f32 %v474, 0.0
        %v503 = vmax.f32 %v477, 0.0
        %v504 = vmax.f32 %v482, 0.0
        %v505 = vmax.f32 %v485, 0.0
        %v506 = vmax.f32 %v490, 0.0
        %v507 = vmax.f32 %v493, 0.0
        %v508 = vpack.c.bf16 %v501, %v500
        %v509 = vpack.c.bf16 %v503, %v502
        %v510 = vpack.c.bf16 %v505, %v504
        %v511 = vpack.c.bf16 %v507, %v506
        %v516 = vunpack.c.l.b16 %v508
        %v517 = vunpack.c.h.b16 %v508
        %v518 = vunpack.c.l.b16 %v509
        %v519 = vunpack.c.h.b16 %v509
        %v520 = vunpack.c.l.b16 %v510
        %v521 = vunpack.c.h.b16 %v510
        %v522 = vunpack.c.l.b16 %v511
        %v523 = vunpack.c.h.b16 %v511
        %v524 = vpack.c.b16 %v516, %v516
        %v525 = vpack.c.b16 %v517, %v517
        %v526 = vpack.c.b16 %v518, %v518
        %v527 = vpack.c.b16 %v519, %v519
        %v528 = vpack.c.b16 %v520, %v520
        %v529 = vpack.c.b16 %v521, %v521
        %v530 = vpack.c.b16 %v522, %v522
        %v531 = vpack.c.b16 %v523, %v523
        %540 = vst [vmem:[#allocation2] sm:$0xf] %v524
        %541 = vst [vmem:[#allocation2 + $0x4] sm:$0xf] %v525
        %542 = vst [vmem:[#allocation2 + $0x8] sm:$0xf] %v526
        %543 = vst [vmem:[#allocation2 + $0xc] sm:$0xf] %v527
        %544 = vst [vmem:[#allocation2 + $0x10] sm:$0xf] %v528
        %545 = vst [vmem:[#allocation2 + $0x14] sm:$0xf] %v529
        %546 = vst [vmem:[#allocation2 + $0x18] sm:$0xf] %v530
        %547 = vst [vmem:[#allocation2 + $0x1c] sm:$0xf] %v531
      $region44: #{gnn_forward.1} parent=35 // pred_fallthru
        _
      %p548 = scmp.eq.s32.totalorder %s15, 2
      // Predicated region
      $region45: #{gnn_forward.1} parent=35 // pred_check
        %p549 = pneg %p548
      $region46: #{gnn_forward.1} parent=35 // pred_check_branch
        %551 = sbr.rel (%p549) target = $region48
      $region47: #{gnn_forward.1} parent=35 // pred_region
        %552 = vst [vmem:[%s4] sm:$0xff] %v466
        %553 = vst [vmem:[%s4 + $0x8] sm:$0xff] %v469
        %554 = vst [vmem:[%s4 + $0x10] sm:$0xff] %v474
        %555 = vst [vmem:[%s4 + $0x18] sm:$0xff] %v477
        %556 = vst [vmem:[%s4 + $0x20] sm:$0xff] %v482
        %557 = vst [vmem:[%s4 + $0x28] sm:$0xff] %v485
        %558 = vst [vmem:[%s4 + $0x30] sm:$0xff] %v490
        %559 = vst [vmem:[%s4 + $0x38] sm:$0xff] %v493
      $region48: #{gnn_forward.1} parent=35 // pred_fallthru
        _
      // Predicated region
      $region49: #{gnn_forward.1} parent=35 // pred_check
        %p560 = pneg %p122
      $region50: #{gnn_forward.1} parent=35 // pred_check_branch
        %562 = sbr.rel (%p560) target = $region52
      $region51: #{gnn_forward.1} parent=35 // pred_region
        _
      $region52: #{gnn_forward.1} parent=35 // pred_fallthru
        _
      // Predicated region
      $region53: #{gnn_forward.1} parent=35 // pred_check
        %p563 = pneg %p122
      $region54: #{gnn_forward.1} parent=35 // pred_check_branch
        %565 = sbr.rel (%p563) target = $region56
      $region55: #{gnn_forward.1} parent=35 // pred_region
        _
      $region56: #{gnn_forward.1} parent=35 // pred_fallthru
        _
    $region36: #{gnn_forward.1} parent=5 // pred_fallthru
      _
    %p566 = scmp.le.s32.totalorder 2, %s10
    // Predicated region
    $region57: #{gnn_forward.1} parent=5 // pred_check
      %p567 = pneg %p566
    $region58: #{gnn_forward.1} parent=5 // pred_check_branch
      %569 = sbr.rel (%p567) target = $region60
    $region59: #{gnn_forward.1} parent=5 // pred_region
      %s570 = ssub.s32 %s10, 2
    $region60: #{gnn_forward.1} parent=5 // pred_fallthru
      _
  $region6: #{gnn_forward.1} parent=0 // loop_footer
    %s14 = sadd.s32 1, %s10
  $region7: #{gnn_forward.1} parent=0 // loop_footer_branch
    %9 = sbr.rel target = $region3
  $region8: #{gnn_forward.1} parent=0 // loop_exit
    _

</llo_original>
